<compile_context>
chip_gen: v7x
topology: tpu7x:2x2x1
jax: 0.10.0
libtpu: 0.0.40
codegen_flags: <defaults>
</compile_context>

<pallas_src>
import functools
import math

import jax
import jax.numpy as jnp
import numpy as np
from jax.experimental import pallas as pl
from jax.experimental.pallas import tpu as pltpu


# ---------------------------------------------------------------------------
# Kernel
# ---------------------------------------------------------------------------
def _duration_lstm_seq_kernel(fd_ref, bank_ref, prex_ref, wh_ref, h0_ref, c0_ref,
                              h_seq_ref, c_fin_ref,
                              h_sc, c_sc, mask_sc,
                              *, adapt, rescale_rate, scale_rate):
    """One grid step == one timestep of the recurrence.

    Column layout of every 4*N*H wide tensor is gate-major:
        [ i (N*H) | f (N*H) | o (N*H) | g (N*H) ]
    with N*H a multiple of 128 lanes, so every gate slice is full-vreg aligned.

    wh_ref / fd_ref / bank_ref / h0_ref / c0_ref have constant block indices
    -> fetched into VMEM once; h/c/mask persist in VMEM scratch across steps.
    """
    t = pl.program_id(0)
    nh = h_sc.shape[-1]                                   # N * H

    @pl.when(t == 0)
    def _init():
        h_sc[...] = h0_ref[...]
        c_sc[...] = c0_ref[...]
        bank = bank_ref[...]                              # (1, NH) bank index n
        scaled = fd_ref[...] * (1.0 / rescale_rate)       # (Bp, 1)
        if adapt:
            m = jax.nn.sigmoid((bank - 0.5 - scaled) * scale_rate)   # (Bp, NH)
            mask_sc[...] = jnp.where(bank < 0.5, 0.0, m)  # bank 0 -> mask 0
        else:
            mask_sc[...] = (bank > jnp.floor(scaled)).astype(jnp.float32)

    # Recurrent pre-activation: hoisted x-projection slab + h @ block-diag W_h.
    pre = prex_ref[0] + jnp.dot(h_sc[...].astype(wh_ref.dtype), wh_ref[...],
                                preferred_element_type=jnp.float32)

    gate_i = jax.nn.sigmoid(pre[:, 0 * nh:1 * nh])
    gate_f = jax.nn.sigmoid(pre[:, 1 * nh:2 * nh])
    gate_o = jax.nn.sigmoid(pre[:, 2 * nh:3 * nh])
    g_node = jnp.tanh(pre[:, 3 * nh:4 * nh])

    c_old = c_sc[...]
    mask = mask_sc[...]
    c_new = gate_f * c_old + gate_i * g_node
    c_new = c_new * (1.0 - mask) + c_old * mask
    h_new = gate_o * jnp.tanh(c_new)

    h_sc[...] = h_new
    c_sc[...] = c_new
    h_seq_ref[0] = h_new
    c_fin_ref[...] = c_new                                 # written back once at end


# ---------------------------------------------------------------------------
# Parameter re-layout (one time)
# ---------------------------------------------------------------------------
def prepare_params(params, input_size, hidden_size, n_hiddens,
                   matmul_dtype=jnp.bfloat16):
    """Re-layout PyTorch parameters once (gate-major, lane-dense columns).

    Column index = g*(N*H) + n*H + k   (gate g, bank n, hidden unit k).
    matmul_dtype defaults to bf16 (halves weight DMA / resident VMEM on
    v6e/v7x, MXU accumulates in f32 either way); pass jnp.float32 when tight
    numerical agreement with the f32 reference is required.
    """
    N, H, D = n_hiddens, hidden_size, input_size
    w = params["weight_ih_ifog"]                          # (N, D+H, 4H)
    w_g = w.reshape(N, D + H, 4, H)

    # shared-input part: (D, 4*N*H)
    wx = jnp.transpose(w_g[:, :D], (1, 2, 0, 3)).reshape(D, 4 * N * H)

    # recurrent part as block-diagonal (N*H, 4*N*H): bank n's h only feeds
    # bank n's gates.
    wh = w_g[:, D:]                                       # (N, H, 4, H)
    eye = jnp.eye(N, dtype=w.dtype)
    wh_bd = jnp.einsum("nhgk,nm->nhgmk", wh, eye).reshape(N * H, 4 * N * H)

    bias = (params["bias_i_ifog"] + params["bias_h_ifog"]).reshape(N, 4, H)
    bias = jnp.transpose(bias, (1, 0, 2)).reshape(1, 4 * N * H)

    return {"wx": wx.astype(matmul_dtype),
            "wh_bd": wh_bd.astype(matmul_dtype),
            "bias": bias.astype(jnp.float32)}


# ---------------------------------------------------------------------------
# Wrappers
# ---------------------------------------------------------------------------
def duration_lstm_sequence(x_seq, hidden, fix_duration, prepped, *, n_hiddens,
                           hidden_size, rescale_rate, adapt=False, scale_rate=2):
    """Apply the duration-LSTM cell over a sequence in a single pallas_call.

    x_seq : (T, B, input_size)  (each step is the PyTorch dim==3 input path)
    hidden: (h, c), each (n_hiddens, B, hidden_size)
    Returns (h_seq, c_final): (T, n_hiddens, B, H) and (n_hiddens, B, H).
    """
    h0, c0 = hidden
    T, B, D = x_seq.shape
    N, H = n_hiddens, hidden_size
    NH = N * H

    Bp = max(8, ((B + 7) // 8) * 8)
    pad = Bp - B

    # Hoisted input projection for the whole sequence (one big MXU matmul),
    # bias folded in here so the kernel has no bias operand.
    x2d = x_seq.reshape(T * B, D).astype(prepped["wx"].dtype)
    prex = jnp.dot(x2d, prepped["wx"],
                   preferred_element_type=jnp.float32,
                   precision=jax.lax.Precision.HIGHEST) + prepped["bias"]
    prex = prex.reshape(T, B, 4 * NH)

    # State -> lane-dense (B, N*H) once per sequence.
    h_flat = jnp.transpose(h0, (1, 0, 2)).reshape(B, NH).astype(jnp.float32)
    c_flat = jnp.transpose(c0, (1, 0, 2)).reshape(B, NH).astype(jnp.float32)
    fd = fix_duration.astype(jnp.float32).reshape(B, 1)

    if pad:
        prex = jnp.pad(prex, ((0, 0), (0, pad), (0, 0)))
        h_flat = jnp.pad(h_flat, ((0, pad), (0, 0)))
        c_flat = jnp.pad(c_flat, ((0, pad), (0, 0)))
        fd = jnp.pad(fd, ((0, pad), (0, 0)))

    # per-lane bank index (0,0,...,1,1,...): column n*H+k holds float(n)
    bank = jnp.repeat(jnp.arange(N, dtype=jnp.float32), H).reshape(1, NH)

    kernel = functools.partial(
        _duration_lstm_seq_kernel, adapt=adapt,
        rescale_rate=float(rescale_rate), scale_rate=float(scale_rate))

    const2 = lambda t: (0, 0)
    h_seq, c_fin = pl.pallas_call(
        kernel,
        grid=(T,),
        out_shape=(jax.ShapeDtypeStruct((T, Bp, NH), jnp.float32),
                   jax.ShapeDtypeStruct((Bp, NH), jnp.float32)),
        in_specs=[
            pl.BlockSpec((Bp, 1), const2),                        # fix_duration
            pl.BlockSpec((1, NH), const2),                        # bank index
            pl.BlockSpec((1, Bp, 4 * NH), lambda t: (t, 0, 0)),   # pre_x slab
            pl.BlockSpec((NH, 4 * NH), const2),                   # wh_bd (resident)
            pl.BlockSpec((Bp, NH), const2),                       # h0
            pl.BlockSpec((Bp, NH), const2),                       # c0
        ],
        out_specs=(pl.BlockSpec((1, Bp, NH), lambda t: (t, 0, 0)),
                   pl.BlockSpec((Bp, NH), const2)),
        scratch_shapes=[pltpu.VMEM((Bp, NH), jnp.float32),        # h state
                        pltpu.VMEM((Bp, NH), jnp.float32),        # c state
                        pltpu.VMEM((Bp, NH), jnp.float32)],       # duration mask
        input_output_aliases={5: 1},                              # c0 buffer -> c_fin
        compiler_params=pltpu.CompilerParams(
            dimension_semantics=("arbitrary",)),
    )(fd, bank, prex, prepped["wh_bd"], h_flat, c_flat)

    h_seq = h_seq[:, :B].reshape(T, B, N, H).transpose(0, 2, 1, 3)
    c_fin = jnp.transpose(c_fin[:B].reshape(B, N, H), (1, 0, 2))
    return h_seq, c_fin


def duration_lstm_cell_v1(input_x, hidden, fix_duration, prepped, *, n_hiddens,
                          hidden_size, rescale_rate, adapt=False, scale_rate=2):
    """Single-step forward matching the PyTorch module (dim==3 input path).

    input_x: (B, 1, input_size); hidden: (h, c) each (n_hiddens, B, H).
    """
    # TODO(synk): dim==4 input path (per-bank inputs via squeeze(0)) not
    # implemented; it needs the per-bank batched formulation.
    B, _, D = input_x.shape
    x_seq = input_x.reshape(1, B, D)
    h_seq, c_fin = duration_lstm_sequence(
        x_seq, hidden, fix_duration, prepped,
        n_hiddens=n_hiddens, hidden_size=hidden_size,
        rescale_rate=rescale_rate, adapt=adapt, scale_rate=scale_rate)
    return h_seq[0], c_fin


# ---------------------------------------------------------------------------
# Pure-JAX reference (mirror of the PyTorch forward)
# ---------------------------------------------------------------------------
def _reference_cell(input_x, hidden, fix_duration, params, *, n_hiddens,
                    hidden_size, rescale_rate, adapt=False, scale_rate=2):
    h, c = hidden
    B = input_x.shape[0]
    H = hidden_size
    N = n_hiddens
    x_exp = jnp.broadcast_to(jnp.transpose(input_x, (1, 0, 2)),
                             (N, B, input_x.shape[2]))
    if adapt:
        m = jax.nn.sigmoid(
            (jnp.arange(1, N, dtype=jnp.float32)[:, None]
             - 0.5 - (fix_duration / rescale_rate)[None, :]) * scale_rate)
        mask = jnp.concatenate([jnp.zeros((1, B), jnp.float32), m], axis=0)
        mask = mask[:, :, None]
    else:
        mask = (jnp.arange(N)[:, None]
                > jnp.floor(fix_duration / rescale_rate)[None, :])
        mask = mask.astype(jnp.float32)[:, :, None]
    c_old = c
    combined = jnp.concatenate([x_exp, h], axis=2)
    pre = jnp.einsum("nbd,ndk->nbk", combined, params["weight_ih_ifog"],
                     precision=jax.lax.Precision.HIGHEST)
    pre = pre + (params["bias_i_ifog"] + params["bias_h_ifog"])[:, None, :]
    gate_ifo = jax.nn.sigmoid(pre[:, :, :3 * H])
    g = jnp.tanh(pre[:, :, 3 * H:])
    c = gate_ifo[:, :, H:2 * H] * c + gate_ifo[:, :, :H] * g
    c = c * (1 - mask) + c_old * mask
    h = gate_ifo[:, :, 2 * H:] * jnp.tanh(c)
    return h, c


def _reference_sequence(x_seq, hidden, fix_duration, params, **kw):
    h, c = hidden
    hs = []
    for t in range(x_seq.shape[0]):
        h, c = _reference_cell(x_seq[t][:, None, :], (h, c), fix_duration,
                               params, **kw)
        hs.append(h)
    return jnp.stack(hs, 0), c


# ---------------------------------------------------------------------------
# Self-test
# ---------------------------------------------------------------------------
if __name__ == "__main__":
    input_size = 16
    hidden_size = 32
    n_hiddens = 4
    max_duration = 8
    rescale_rate = max_duration // n_hiddens
    batch = 4
    seq_len = 6

    key = jax.random.PRNGKey(0)
    k_w, k_bi, k_bh, k_x, k_xs, k_h, k_c = jax.random.split(key, 7)

    k_init = math.sqrt(1.0 / hidden_size)
    params = {
        "weight_ih_ifog": jax.random.uniform(
            k_w, (n_hiddens, input_size + hidden_size, hidden_size * 4),
            minval=-k_init, maxval=k_init, dtype=jnp.float32),
        "bias_i_ifog": jax.random.uniform(
            k_bi, (n_hiddens, hidden_size * 4),
            minval=-k_init, maxval=k_init, dtype=jnp.float32),
        "bias_h_ifog": jax.random.uniform(
            k_bh, (n_hiddens, hidden_size * 4),
            minval=-k_init, maxval=k_init, dtype=jnp.float32),
    }

    input_x = jax.random.normal(k_x, (batch, 1, input_size), dtype=jnp.float32)
    x_seq = jax.random.normal(k_xs, (seq_len, batch, input_size), dtype=jnp.float32)
    h0 = jax.random.normal(k_h, (n_hiddens, batch, hidden_size), dtype=jnp.float32)
    c0 = jax.random.normal(k_c, (n_hiddens, batch, hidden_size), dtype=jnp.float32)
    fix_duration = jnp.array([0.0, 2.0, 5.0, 7.0], dtype=jnp.float32)

    cfg = dict(n_hiddens=n_hiddens, hidden_size=hidden_size,
               rescale_rate=rescale_rate)

    # f32 weights for tight-tolerance checks; bf16 (default) checked below.
    prepped_f32 = prepare_params(params, input_size, hidden_size, n_hiddens,
                                 matmul_dtype=jnp.float32)
    prepped_bf16 = prepare_params(params, input_size, hidden_size, n_hiddens)

    cell = jax.jit(functools.partial(duration_lstm_cell_v1, adapt=False, **cfg))
    cell_adapt = jax.jit(functools.partial(duration_lstm_cell_v1, adapt=True,
                                           scale_rate=2, **cfg))
    seq_fwd = jax.jit(functools.partial(duration_lstm_sequence, adapt=False, **cfg))

    # --- single-step cell, adapt=False ------------------------------------
    h_new, c_new = cell(input_x, (h0, c0), fix_duration, prepped_f32)
    jax.block_until_ready((h_new, c_new))
    h_ref, c_ref = _reference_cell(input_x, (h0, c0), fix_duration, params,
                                   adapt=False, **cfg)
    np.testing.assert_allclose(np.asarray(h_new), np.asarray(h_ref),
                               rtol=1e-5, atol=1e-5)
    np.testing.assert_allclose(np.asarray(c_new), np.asarray(c_ref),
                               rtol=1e-5, atol=1e-5)

    # --- single-step cell, adapt=True --------------------------------------
    h_a, c_a = cell_adapt(input_x, (h0, c0), fix_duration, prepped_f32)
    jax.block_until_ready((h_a, c_a))
    h_ra, c_ra = _reference_cell(input_x, (h0, c0), fix_duration, params,
                                 adapt=True, scale_rate=2, **cfg)
    np.testing.assert_allclose(np.asarray(h_a), np.asarray(h_ra),
                               rtol=1e-5, atol=1e-5)
    np.testing.assert_allclose(np.asarray(c_a), np.asarray(c_ra),
                               rtol=1e-5, atol=1e-5)

    # --- fused time loop over T steps (single pallas_call) ------------------
    h_seq, c_fin = seq_fwd(x_seq, (h0, c0), fix_duration, prepped_f32)
    jax.block_until_ready((h_seq, c_fin))
    h_seq_ref, c_fin_ref = _reference_sequence(x_seq, (h0, c0), fix_duration,
                                               params, adapt=False, **cfg)
    np.testing.assert_allclose(np.asarray(h_seq), np.asarray(h_seq_ref),
                               rtol=1e-4, atol=1e-4)
    np.testing.assert_allclose(np.asarray(c_fin), np.asarray(c_fin_ref),
                               rtol=1e-4, atol=1e-4)

    # --- default bf16 weights (v6e/v7x fast path), loose tolerance ----------
    h_b, c_b = cell(input_x, (h0, c0), fix_duration, prepped_bf16)
    jax.block_until_ready((h_b, c_b))
    np.testing.assert_allclose(np.asarray(h_b), np.asarray(h_ref),
                               rtol=1e-1, atol=1e-1)
    np.testing.assert_allclose(np.asarray(c_b), np.asarray(c_b if False else c_ref),
                               rtol=1e-1, atol=1e-1)

    print("KERNEL_OK")
</pallas_src>

<mosaic_0001>
module attributes {stable_mosaic.version = 11 : i64} {
  func.func @_duration_lstm_seq_kernel(%arg0: i32, %arg1: memref<8x1xf32, #tpu.memory_space<vmem>>, %arg2: memref<1x128xf32, #tpu.memory_space<vmem>>, %arg3: memref<1x8x512xf32, #tpu.memory_space<vmem>>, %arg4: memref<128x512xf32, #tpu.memory_space<vmem>>, %arg5: memref<8x128xf32, #tpu.memory_space<vmem>>, %arg6: memref<8x128xf32, #tpu.memory_space<vmem>>, %arg7: memref<1x8x128xf32, #tpu.memory_space<vmem>>, %arg8: memref<8x128xf32, #tpu.memory_space<vmem>>, %arg9: memref<8x128xf32, #tpu.memory_space<vmem>>, %arg10: memref<8x128xf32, #tpu.memory_space<vmem>>, %arg11: memref<8x128xf32, #tpu.memory_space<vmem>>) attributes {dimension_semantics = [#tpu.dimension_semantics<arbitrary>], iteration_bounds = array<i64: 1>, scalar_prefetch = 0 : i64, scratch_operands = 3 : i64, tpu.core_type = #tpu.core_type<tc>, window_params = [{pipeline_mode = #tpu.pipeline_mode<synchronous>, transform_indices = @transform_0, window_bounds = array<i64: 8, 1>}, {pipeline_mode = #tpu.pipeline_mode<synchronous>, transform_indices = @transform_1, window_bounds = array<i64: 1, 128>}, {transform_indices = @transform_2, window_bounds = array<i64: 1, 8, 512>}, {pipeline_mode = #tpu.pipeline_mode<synchronous>, transform_indices = @transform_3, window_bounds = array<i64: 128, 512>}, {pipeline_mode = #tpu.pipeline_mode<synchronous>, transform_indices = @transform_4, window_bounds = array<i64: 8, 128>}, {pipeline_mode = #tpu.pipeline_mode<synchronous>, transform_indices = @transform_5, window_bounds = array<i64: 8, 128>}, {transform_indices = @transform_6, window_bounds = array<i64: 1, 8, 128>}, {pipeline_mode = #tpu.pipeline_mode<synchronous>, transform_indices = @transform_7, window_bounds = array<i64: 8, 128>}]} {
    %c0_i32 = arith.constant 0 : i32
    %0 = arith.cmpi eq, %arg0, %c0_i32 : i32
    %1 = arith.extui %0 : i1 to i32
    %c0_i32_0 = arith.constant 0 : i32
    %2 = arith.cmpi ne, %1, %c0_i32_0 : i32
    scf.if %2 {
      %c0_24 = arith.constant 0 : index
      %c0_25 = arith.constant 0 : index
      %47 = vector.load %arg5[%c0_24, %c0_25] : memref<8x128xf32, #tpu.memory_space<vmem>>, vector<8x128xf32>
      %c0_26 = arith.constant 0 : index
      %c0_27 = arith.constant 0 : index
      %48 = vector.load %arg9[%c0_26, %c0_27] : memref<8x128xf32, #tpu.memory_space<vmem>>, vector<8x128xf32>
      tpu.vector_store %arg9[%c0_26, %c0_27], %47 {strides = array<i32>} : memref<8x128xf32, #tpu.memory_space<vmem>>, vector<8x128xf32>,
      %c0_28 = arith.constant 0 : index
      %c0_29 = arith.constant 0 : index
      %49 = vector.load %arg6[%c0_28, %c0_29] : memref<8x128xf32, #tpu.memory_space<vmem>>, vector<8x128xf32>
      %c0_30 = arith.constant 0 : index
      %c0_31 = arith.constant 0 : index
      %50 = vector.load %arg10[%c0_30, %c0_31] : memref<8x128xf32, #tpu.memory_space<vmem>>, vector<8x128xf32>
      tpu.vector_store %arg10[%c0_30, %c0_31], %49 {strides = array<i32>} : memref<8x128xf32, #tpu.memory_space<vmem>>, vector<8x128xf32>,
      %c0_32 = arith.constant 0 : index
      %c0_33 = arith.constant 0 : index
      %51 = vector.load %arg2[%c0_32, %c0_33] : memref<1x128xf32, #tpu.memory_space<vmem>>, vector<1x128xf32>
      %c0_34 = arith.constant 0 : index
      %c0_35 = arith.constant 0 : index
      %52 = vector.load %arg1[%c0_34, %c0_35] : memref<8x1xf32, #tpu.memory_space<vmem>>, vector<8x1xf32>
      %cst_36 = arith.constant 5.000000e-01 : f32
      %53 = vector.broadcast %cst_36 : f32 to vector<8x1xf32>
      %54 = arith.mulf %52, %53 : vector<8x1xf32>
      %55 = math.floor %54 : vector<8x1xf32>
      %56 = vector.broadcast %51 : vector<1x128xf32> to vector<8x128xf32>
      %57 = vector.broadcast %55 : vector<8x1xf32> to vector<8x128xf32>
      %58 = arith.cmpf ogt, %56, %57 : vector<8x128xf32>
      %59 = arith.extui %58 : vector<8x128xi1> to vector<8x128xi32>
      %60 = arith.sitofp %59 : vector<8x128xi32> to vector<8x128xf32>
      %c0_37 = arith.constant 0 : index
      %c0_38 = arith.constant 0 : index
      %61 = vector.load %arg11[%c0_37, %c0_38] : memref<8x128xf32, #tpu.memory_space<vmem>>, vector<8x128xf32>
      tpu.vector_store %arg11[%c0_37, %c0_38], %60 {strides = array<i32>} : memref<8x128xf32, #tpu.memory_space<vmem>>, vector<8x128xf32>,
    } else {
    }
    %c0 = arith.constant 0 : index
    %c0_1 = arith.constant 0 : index
    %c0_2 = arith.constant 0 : index
    %3 = vector.load %arg3[%c0, %c0_1, %c0_2] : memref<1x8x512xf32, #tpu.memory_space<vmem>>, vector<1x8x512xf32>
    %4 = vector.shape_cast %3 : vector<1x8x512xf32> to vector<8x512xf32>
    %c0_3 = arith.constant 0 : index
    %c0_4 = arith.constant 0 : index
    %5 = vector.load %arg9[%c0_3, %c0_4] : memref<8x128xf32, #tpu.memory_space<vmem>>, vector<8x128xf32>
    %c0_5 = arith.constant 0 : index
    %c0_6 = arith.constant 0 : index
    %6 = vector.load %arg4[%c0_5, %c0_6] : memref<128x512xf32, #tpu.memory_space<vmem>>, vector<128x512xf32>
    %cst = arith.constant dense<0.000000e+00> : vector<8x512xf32>
    %7 = tpu.matmul %5, %6, %cst {dimension_numbers = #tpu.dot_dimension_numbers<[1], [0], [0], [1], [0, 0, 1, 1], [], []>} : vector<8x128xf32>, vector<128x512xf32>, vector<8x512xf32> -> vector<8x512xf32>
    %8 = arith.addf %4, %7 : vector<8x512xf32>
    %9 = vector.extract_strided_slice %8 {offsets = [0, 0], sizes = [8, 128], strides = [1, 1]} : vector<8x512xf32> to vector<8x128xf32>
    %10 = arith.negf %9 : vector<8x128xf32>
    %11 = math.exp %10 : vector<8x128xf32>
    %cst_7 = arith.constant 1.000000e+00 : f32
    %12 = vector.broadcast %cst_7 : f32 to vector<8x128xf32>
    %13 = arith.addf %12, %11 : vector<8x128xf32>
    %14 = arith.divf %12, %13 : vector<8x128xf32>
    %15 = vector.extract_strided_slice %8 {offsets = [0, 128], sizes = [8, 128], strides = [1, 1]} : vector<8x512xf32> to vector<8x128xf32>
    %16 = arith.negf %15 : vector<8x128xf32>
    %17 = math.exp %16 : vector<8x128xf32>
    %cst_8 = arith.constant 1.000000e+00 : f32
    %18 = vector.broadcast %cst_8 : f32 to vector<8x128xf32>
    %19 = arith.addf %18, %17 : vector<8x128xf32>
    %20 = arith.divf %18, %19 : vector<8x128xf32>
    %21 = vector.extract_strided_slice %8 {offsets = [0, 256], sizes = [8, 128], strides = [1, 1]} : vector<8x512xf32> to vector<8x128xf32>
    %22 = arith.negf %21 : vector<8x128xf32>
    %23 = math.exp %22 : vector<8x128xf32>
    %cst_9 = arith.constant 1.000000e+00 : f32
    %24 = vector.broadcast %cst_9 : f32 to vector<8x128xf32>
    %25 = arith.addf %24, %23 : vector<8x128xf32>
    %26 = arith.divf %24, %25 : vector<8x128xf32>
    %27 = vector.extract_strided_slice %8 {offsets = [0, 384], sizes = [8, 128], strides = [1, 1]} : vector<8x512xf32> to vector<8x128xf32>
    %28 = math.tanh %27 : vector<8x128xf32>
    %c0_10 = arith.constant 0 : index
    %c0_11 = arith.constant 0 : index
    %29 = vector.load %arg10[%c0_10, %c0_11] : memref<8x128xf32, #tpu.memory_space<vmem>>, vector<8x128xf32>
    %c0_12 = arith.constant 0 : index
    %c0_13 = arith.constant 0 : index
    %30 = vector.load %arg11[%c0_12, %c0_13] : memref<8x128xf32, #tpu.memory_space<vmem>>, vector<8x128xf32>
    %31 = arith.mulf %20, %29 : vector<8x128xf32>
    %32 = arith.mulf %14, %28 : vector<8x128xf32>
    %33 = arith.addf %31, %32 : vector<8x128xf32>
    %cst_14 = arith.constant 1.000000e+00 : f32
    %34 = vector.broadcast %cst_14 : f32 to vector<8x128xf32>
    %35 = arith.subf %34, %30 : vector<8x128xf32>
    %36 = arith.mulf %33, %35 : vector<8x128xf32>
    %37 = arith.mulf %29, %30 : vector<8x128xf32>
    %38 = arith.addf %36, %37 : vector<8x128xf32>
    %39 = math.tanh %38 : vector<8x128xf32>
    %40 = arith.mulf %26, %39 : vector<8x128xf32>
    %c0_15 = arith.constant 0 : index
    %c0_16 = arith.constant 0 : index
    %41 = vector.load %arg9[%c0_15, %c0_16] : memref<8x128xf32, #tpu.memory_space<vmem>>, vector<8x128xf32>
    tpu.vector_store %arg9[%c0_15, %c0_16], %40 {strides = array<i32>} : memref<8x128xf32, #tpu.memory_space<vmem>>, vector<8x128xf32>,
    %c0_17 = arith.constant 0 : index
    %c0_18 = arith.constant 0 : index
    %42 = vector.load %arg10[%c0_17, %c0_18] : memref<8x128xf32, #tpu.memory_space<vmem>>, vector<8x128xf32>
    tpu.vector_store %arg10[%c0_17, %c0_18], %38 {strides = array<i32>} : memref<8x128xf32, #tpu.memory_space<vmem>>, vector<8x128xf32>,
    %c0_19 = arith.constant 0 : index
    %c0_20 = arith.constant 0 : index
    %c0_21 = arith.constant 0 : index
    %43 = vector.load %arg7[%c0_19, %c0_20, %c0_21] : memref<1x8x128xf32, #tpu.memory_space<vmem>>, vector<1x8x128xf32>
    %44 = vector.shape_cast %43 : vector<1x8x128xf32> to vector<8x128xf32>
    %45 = vector.shape_cast %40 : vector<8x128xf32> to vector<1x8x128xf32>
    tpu.vector_store %arg7[%c0_19, %c0_20, %c0_21], %45 {strides = array<i32>} : memref<1x8x128xf32, #tpu.memory_space<vmem>>, vector<1x8x128xf32>,
    %c0_22 = arith.constant 0 : index
    %c0_23 = arith.constant 0 : index
    %46 = vector.load %arg8[%c0_22, %c0_23] : memref<8x128xf32, #tpu.memory_space<vmem>>, vector<8x128xf32>
    tpu.vector_store %arg8[%c0_22, %c0_23], %38 {strides = array<i32>} : memref<8x128xf32, #tpu.memory_space<vmem>>, vector<8x128xf32>,
    return
  }
  func.func @transform_0(%arg0: i32) -> (i32, i32) {
    %c0_i32 = arith.constant 0 : i32
    %c0_i32_0 = arith.constant 0 : i32
    %c0_i32_1 = arith.constant 0 : i32
    return %c0_i32, %c0_i32_0 : i32, i32
  }
  func.func @transform_1(%arg0: i32) -> (i32, i32) {
    %c0_i32 = arith.constant 0 : i32
    %c0_i32_0 = arith.constant 0 : i32
    %c0_i32_1 = arith.constant 0 : i32
    return %c0_i32, %c0_i32_0 : i32, i32
  }
  func.func @transform_2(%arg0: i32) -> (i32, i32, i32) {
    %c0_i32 = arith.constant 0 : i32
    %c0_i32_0 = arith.constant 0 : i32
    %c0_i32_1 = arith.constant 0 : i32
    return %arg0, %c0_i32, %c0_i32_0 : i32, i32, i32
  }
  func.func @transform_3(%arg0: i32) -> (i32, i32) {
    %c0_i32 = arith.constant 0 : i32
    %c0_i32_0 = arith.constant 0 : i32
    %c0_i32_1 = arith.constant 0 : i32
    return %c0_i32, %c0_i32_0 : i32, i32
  }
  func.func @transform_4(%arg0: i32) -> (i32, i32) {
    %c0_i32 = arith.constant 0 : i32
    %c0_i32_0 = arith.constant 0 : i32
    %c0_i32_1 = arith.constant 0 : i32
    return %c0_i32, %c0_i32_0 : i32, i32
  }
  func.func @transform_5(%arg0: i32) -> (i32, i32) {
    %c0_i32 = arith.constant 0 : i32
    %c0_i32_0 = arith.constant 0 : i32
    %c0_i32_1 = arith.constant 0 : i32
    return %c0_i32, %c0_i32_0 : i32, i32
  }
  func.func @transform_6(%arg0: i32) -> (i32, i32, i32) {
    %c0_i32 = arith.constant 0 : i32
    %c0_i32_0 = arith.constant 0 : i32
    %c0_i32_1 = arith.constant 0 : i32
    return %arg0, %c0_i32, %c0_i32_0 : i32, i32, i32
  }
  func.func @transform_7(%arg0: i32) -> (i32, i32) {
    %c0_i32 = arith.constant 0 : i32
    %c0_i32_0 = arith.constant 0 : i32
    %c0_i32_1 = arith.constant 0 : i32
    return %c0_i32, %c0_i32_0 : i32, i32
  }
}

</mosaic_0001>

<llo_original>
// kernel: duration_lstm_cell_v1.1
$region0: #{duration_lstm_cell_v1.1}
  #allocation0 [shape = 'u32[]', space=smem, size = 0x4, offset = 0x4, fixed_abs, tag = 'smem constant byte address 0x4 - core index']
  #allocation1 [shape = 'u32[144,128]{1,0:T(1,128)}', space=vmem, size = 0x12000, scoped, tag = 'internal scratch']
  #allocation2 [shape = 'f32[8,128]{1,0:T(8,128)}', space=vmem, size = 0x1000, scoped, tag = 'scratch operand']
  #allocation3 [shape = 'f32[8,128]{1,0:T(8,128)}', space=vmem, size = 0x1000, scoped, tag = 'scratch operand']
  #allocation4 [shape = 'f32[8,128]{1,0:T(8,128)}', space=vmem, size = 0x1000, scoped, tag = 'scratch operand']
  %s0 = inlined_call_operand.vmem [shape: f32[8,1], index: 0, kind: input, shape index: {}]
  %s1 = inlined_call_operand.vmem [shape: f32[1,128], index: 1, kind: input, shape index: {}]
  %s2 = inlined_call_operand.vmem [shape: f32[1,8,512], index: 2, kind: input, shape index: {}]
  %s3 = inlined_call_operand.hbm [shape: f32[128,512], index: 3, kind: input, shape index: {}]
  %s4 = inlined_call_operand.vmem [shape: f32[8,128], index: 4, kind: input, shape index: {}]
  %s5 = inlined_call_operand.vmem [shape: f32[8,128], index: 5, kind: input, shape index: {}, may-alias: {5,7}]
  %s6 = inlined_call_operand.vmem [shape: f32[1,8,128], index: 6, kind: output, shape index: {0}]
  %s7 = inlined_call_operand.vmem [shape: f32[8,128], index: 7, kind: output, shape index: {1}, may-alias: {5,7}]
  %8 = xla_tuple %s6, %s7
  %s9 = sld [smem:[#allocation0]]
  $region50: #{duration_lstm_cell_v1.1} parent=0
    _
  %s11 = ssub.s32 1, %s9
  %s12 = scalar_select 0, %s11, %s9
  $region1: #{duration_lstm_cell_v1.1} parent=0
    #allocation5 [shape = 'u8[262144]{0}', space=vmem, size = 0x40000, scoped, tag = 'input window, operand 3, single buffered']
    #allocation6 [shape = 's32[1]{0}', space=sflag, size = 0x4, scoped, tag = 'scoped memory for duration_lstm_cell_v1.1']
    %13 = vsyncpa [#allocation6], 0
    // Predicated region
    $region2: #{duration_lstm_cell_v1.1} parent=1 // pred_check
      _
    $region3: #{duration_lstm_cell_v1.1} parent=1 // pred_check_branch
      %15 = sbr.rel (0) target = $region5
    $region4: #{duration_lstm_cell_v1.1} parent=1 // pred_region
      _
    $region5: #{duration_lstm_cell_v1.1} parent=1 // pred_fallthru
      _
    // Predicated region
    $region6: #{duration_lstm_cell_v1.1} parent=1 // pred_check
      _
    $region7: #{duration_lstm_cell_v1.1} parent=1 // pred_check_branch
      %17 = sbr.rel (0) target = $region9
    $region8: #{duration_lstm_cell_v1.1} parent=1 // pred_region
      _
    $region9: #{duration_lstm_cell_v1.1} parent=1 // pred_fallthru
      _
    // Predicated region
    $region10: #{duration_lstm_cell_v1.1} parent=1 // pred_check
      _
    $region11: #{duration_lstm_cell_v1.1} parent=1 // pred_check_branch
      %19 = sbr.rel (0) target = $region13
    $region12: #{duration_lstm_cell_v1.1} parent=1 // pred_region
      _
    $region13: #{duration_lstm_cell_v1.1} parent=1 // pred_fallthru
      _
    // Predicated region
    $region14: #{duration_lstm_cell_v1.1} parent=1 // pred_check
      _
    $region15: #{duration_lstm_cell_v1.1} parent=1 // pred_check_branch
      %21 = sbr.rel (0) target = $region17
    $region16: #{duration_lstm_cell_v1.1} parent=1 // pred_region
      %s23 = ssub.s32 8192, 8192
      %24 = vsyncadd [#allocation6], %s23
      %s25 = sshll.u32 [#allocation5], 4
      %s26 = int_to_ptr.vmem [resolvable:$true] %s25
      %31 = dma.hbm_to_vmem [thread:$0]  %s3, 8192, %s26, [#allocation6], 512, 512, 32
    $region17: #{duration_lstm_cell_v1.1} parent=1 // pred_fallthru
      _
    // Predicated region
    $region18: #{duration_lstm_cell_v1.1} parent=1 // pred_check
      _
    $region19: #{duration_lstm_cell_v1.1} parent=1 // pred_check_branch
      %33 = sbr.rel (0) target = $region21
    $region20: #{duration_lstm_cell_v1.1} parent=1 // pred_region
      _
    $region21: #{duration_lstm_cell_v1.1} parent=1 // pred_fallthru
      _
    // Predicated region
    $region22: #{duration_lstm_cell_v1.1} parent=1 // pred_check
      _
    $region23: #{duration_lstm_cell_v1.1} parent=1 // pred_check_branch
      %35 = sbr.rel (0) target = $region25
    $region24: #{duration_lstm_cell_v1.1} parent=1 // pred_region
      _
    $region25: #{duration_lstm_cell_v1.1} parent=1 // pred_fallthru
      _
    // Predicated region
    $region26: #{duration_lstm_cell_v1.1} parent=1 // pred_check
      _
    $region27: #{duration_lstm_cell_v1.1} parent=1 // pred_check_branch
      %37 = sbr.rel (0) target = $region29
    $region28: #{duration_lstm_cell_v1.1} parent=1 // pred_region
      %38 = dma.done [#allocation6], 8192
    $region29: #{duration_lstm_cell_v1.1} parent=1 // pred_fallthru
      _
    %p39 = scmp.eq.s32.totalorder 0, 0
    // Predicated region
    $region30: #{duration_lstm_cell_v1.1} parent=1 // pred_check
      %p40 = pneg %p39
    $region31: #{duration_lstm_cell_v1.1} parent=1 // pred_check_branch
      %42 = sbr.rel (%p40) target = $region33
    $region32: #{duration_lstm_cell_v1.1} parent=1 // pred_region
      %v43 = vld [vmem:[%s4] sm:$0xff]
      %44 = vst [vmem:[#allocation2] sm:$0xff] %v43
      %v45 = vld [vmem:[%s5] sm:$0xff]
      %46 = vst [vmem:[#allocation3] sm:$0xff] %v45
      %v47 = vld [vmem:[%s1] sm:$0x1]
      %v48 = vld [vmem:[%s0] sm:$0xff]
      %v49 = vmul.f32 %v48, 0.5
      %v50 = vfloor.f32 %v49
      %v52 = vlaneseq
      %v53 = vshrl.u32 %v52, 7
      %v54 = vsub.s32 0, %v53
      %v55 = vrot.slane %v47, %v54
      %58 = vset.pattern.permute.xlu0 0
      %59 = vperm.xlu0 %58, %v50
      %v60 = vpop.permute.xlu0 %59
      %vm62 = vcmp.gt.f32.partialorder %v55, %v60
      %v63 = vsel %vm62, 1, 0
      %v64 = vcvt.s32.f32 %v63
      %65 = vst [vmem:[#allocation4] sm:$0xff] %v64
    $region33: #{duration_lstm_cell_v1.1} parent=1 // pred_fallthru
      _
    %v66 = vld [vmem:[%s2] sm:$0xff]
    %v67 = vld [vmem:[%s2 + $0x8] sm:$0xff]
    %v68 = vld [vmem:[%s2 + $0x10] sm:$0xff]
    %v69 = vld [vmem:[%s2 + $0x18] sm:$0xff]
    %v70 = vld [vmem:[#allocation2] sm:$0xff]
    %v71 = vld [vmem:[#allocation5] sm:$0xff]
    %v72 = vld [vmem:[#allocation5 + $0x8] sm:$0xff]
    %v73 = vld [vmem:[#allocation5 + $0x10] sm:$0xff]
    %v74 = vld [vmem:[#allocation5 + $0x18] sm:$0xff]
    %v75 = vld [vmem:[#allocation5 + $0x20] sm:$0xff]
    %v76 = vld [vmem:[#allocation5 + $0x28] sm:$0xff]
    %v77 = vld [vmem:[#allocation5 + $0x30] sm:$0xff]
    %v78 = vld [vmem:[#allocation5 + $0x38] sm:$0xff]
    %v79 = vld [vmem:[#allocation5 + $0x40] sm:$0xff]
    %v80 = vld [vmem:[#allocation5 + $0x48] sm:$0xff]
    %v81 = vld [vmem:[#allocation5 + $0x50] sm:$0xff]
    %v82 = vld [vmem:[#allocation5 + $0x58] sm:$0xff]
    %v83 = vld [vmem:[#allocation5 + $0x60] sm:$0xff]
    %v84 = vld [vmem:[#allocation5 + $0x68] sm:$0xff]
    %v85 = vld [vmem:[#allocation5 + $0x70] sm:$0xff]
    %v86 = vld [vmem:[#allocation5 + $0x78] sm:$0xff]
    %v87 = vld [vmem:[#allocation5 + $0x80] sm:$0xff]
    %v88 = vld [vmem:[#allocation5 + $0x88] sm:$0xff]
    %v89 = vld [vmem:[#allocation5 + $0x90] sm:$0xff]
    %v90 = vld [vmem:[#allocation5 + $0x98] sm:$0xff]
    %v91 = vld [vmem:[#allocation5 + $0xa0] sm:$0xff]
    %v92 = vld [vmem:[#allocation5 + $0xa8] sm:$0xff]
    %v93 = vld [vmem:[#allocation5 + $0xb0] sm:$0xff]
    %v94 = vld [vmem:[#allocation5 + $0xb8] sm:$0xff]
    %v95 = vld [vmem:[#allocation5 + $0xc0] sm:$0xff]
    %v96 = vld [vmem:[#allocation5 + $0xc8] sm:$0xff]
    %v97 = vld [vmem:[#allocation5 + $0xd0] sm:$0xff]
    %v98 = vld [vmem:[#allocation5 + $0xd8] sm:$0xff]
    %v99 = vld [vmem:[#allocation5 + $0xe0] sm:$0xff]
    %v100 = vld [vmem:[#allocation5 + $0xe8] sm:$0xff]
    %v101 = vld [vmem:[#allocation5 + $0xf0] sm:$0xff]
    %v102 = vld [vmem:[#allocation5 + $0xf8] sm:$0xff]
    %v103 = vld [vmem:[#allocation5 + $0x100] sm:$0xff]
    %v104 = vld [vmem:[#allocation5 + $0x108] sm:$0xff]
    %v105 = vld [vmem:[#allocation5 + $0x110] sm:$0xff]
    %v106 = vld [vmem:[#allocation5 + $0x118] sm:$0xff]
    %v107 = vld [vmem:[#allocation5 + $0x120] sm:$0xff]
    %v108 = vld [vmem:[#allocation5 + $0x128] sm:$0xff]
    %v109 = vld [vmem:[#allocation5 + $0x130] sm:$0xff]
    %v110 = vld [vmem:[#allocation5 + $0x138] sm:$0xff]
    %v111 = vld [vmem:[#allocation5 + $0x140] sm:$0xff]
    %v112 = vld [vmem:[#allocation5 + $0x148] sm:$0xff]
    %v113 = vld [vmem:[#allocation5 + $0x150] sm:$0xff]
    %v114 = vld [vmem:[#allocation5 + $0x158] sm:$0xff]
    %v115 = vld [vmem:[#allocation5 + $0x160] sm:$0xff]
    %v116 = vld [vmem:[#allocation5 + $0x168] sm:$0xff]
    %v117 = vld [vmem:[#allocation5 + $0x170] sm:$0xff]
    %v118 = vld [vmem:[#allocation5 + $0x178] sm:$0xff]
    %v119 = vld [vmem:[#allocation5 + $0x180] sm:$0xff]
    %v120 = vld [vmem:[#allocation5 + $0x188] sm:$0xff]
    %v121 = vld [vmem:[#allocation5 + $0x190] sm:$0xff]
    %v122 = vld [vmem:[#allocation5 + $0x198] sm:$0xff]
    %v123 = vld [vmem:[#allocation5 + $0x1a0] sm:$0xff]
    %v124 = vld [vmem:[#allocation5 + $0x1a8] sm:$0xff]
    %v125 = vld [vmem:[#allocation5 + $0x1b0] sm:$0xff]
    %v126 = vld [vmem:[#allocation5 + $0x1b8] sm:$0xff]
    %v127 = vld [vmem:[#allocation5 + $0x1c0] sm:$0xff]
    %v128 = vld [vmem:[#allocation5 + $0x1c8] sm:$0xff]
    %v129 = vld [vmem:[#allocation5 + $0x1d0] sm:$0xff]
    %v130 = vld [vmem:[#allocation5 + $0x1d8] sm:$0xff]
    %v131 = vld [vmem:[#allocation5 + $0x1e0] sm:$0xff]
    %v132 = vld [vmem:[#allocation5 + $0x1e8] sm:$0xff]
    %v133 = vld [vmem:[#allocation5 + $0x1f0] sm:$0xff]
    %v134 = vld [vmem:[#allocation5 + $0x1f8] sm:$0xff]
    %135 = vmatprep.subr.mxu0 %v72
    %136 = vmatpush1.msra.mxu0 %v71
    %137 = vmatprep.subr.mxu0 %v76
    %138 = vmatpush1.msra.mxu0 %v75
    %139 = vmatprep.subr.mxu0 %v80
    %140 = vmatpush1.msra.mxu0 %v79
    %141 = vmatprep.subr.mxu0 %v84
    %142 = vmatpush1.msra.mxu0 %v83
    %143 = vmatprep.subr.mxu0 %v88
    %144 = vmatpush1.msra.mxu0 %v87
    %145 = vmatprep.subr.mxu0 %v92
    %146 = vmatpush1.msra.mxu0 %v91
    %147 = vmatprep.subr.mxu0 %v96
    %148 = vmatpush1.msra.mxu0 %v95
    %149 = vmatprep.subr.mxu0 %v100
    %150 = vmatpush1.msra.mxu0 %v99
    %151 = vmatprep.subr.mxu0 %v104
    %152 = vmatpush1.msra.mxu0 %v103
    %153 = vmatprep.subr.mxu0 %v108
    %154 = vmatpush1.msra.mxu0 %v107
    %155 = vmatprep.subr.mxu0 %v112
    %156 = vmatpush1.msra.mxu0 %v111
    %157 = vmatprep.subr.mxu0 %v116
    %158 = vmatpush1.msra.mxu0 %v115
    %159 = vmatprep.subr.mxu0 %v120
    %160 = vmatpush1.msra.mxu0 %v119
    %161 = vmatprep.subr.mxu0 %v124
    %162 = vmatpush1.msra.mxu0 %v123
    %163 = vmatprep.subr.mxu0 %v128
    %164 = vmatpush1.msra.mxu0 %v127
    %165 = vmatprep.subr.mxu0 %v132
    %166 = vmatpush1.msra.mxu0 %v131
    %167 = vmatprep.subr.mxu0 0.0
    %168 = vmatpush1.msra.mxu0 0.0
    %169 = vmatprep.subr.mxu0 0.0
    %170 = vmatpush1.msra.mxu0 0.0
    %171 = vmatprep.subr.mxu0 0.0
    %172 = vmatpush1.msra.mxu0 0.0
    %173 = vmatprep.subr.mxu0 0.0
    %174 = vmatpush1.msra.mxu0 0.0
    %175 = vmatprep.subr.mxu0 0.0
    %176 = vmatpush1.msra.mxu0 0.0
    %177 = vmatprep.subr.mxu0 0.0
    %178 = vmatpush1.msra.mxu0 0.0
    %179 = vmatprep.subr.mxu0 0.0
    %180 = vmatpush1.msra.mxu0 0.0
    %181 = vmatprep.subr.mxu0 0.0
    %182 = vmatpush1.msra.mxu0 0.0
    %183 = vmatprep.subr.mxu0 0.0
    %184 = vmatpush1.msra.mxu0 0.0
    %185 = vmatprep.subr.mxu0 0.0
    %186 = vmatpush1.msra.mxu0 0.0
    %187 = vmatprep.subr.mxu0 0.0
    %188 = vmatpush1.msra.mxu0 0.0
    %189 = vmatprep.subr.mxu0 0.0
    %190 = vmatpush1.msra.mxu0 0.0
    %191 = vmatprep.subr.mxu0 0.0
    %192 = vmatpush1.msra.mxu0 0.0
    %193 = vmatprep.subr.mxu0 0.0
    %194 = vmatpush1.msra.mxu0 0.0
    %195 = vmatprep.subr.mxu0 0.0
    %196 = vmatpush1.msra.mxu0 0.0
    %197 = vmatprep.subr.mxu0 0.0
    %198 = vmatpush1.msra.mxu0 0.0
    %199 = vmatprep.mubr.f32.mxu0 0.0
    %200 = vmatmul.mubr.f32.gmra.mrb[0].mxu0 %v70
    %v201 = vpop.f32.mrb[0].mxu0
    %v202 = vadd.f32 0.0, %v201
    %v203 = vpop.f32.mrb[0].mxu0
    %v204 = vadd.f32 0.0, %v203
    %205 = vdwg.mxu0
    %206 = vmatprep.subr.mxu0 %v74
    %207 = vmatpush1.msra.mxu0 %v73
    %208 = vmatprep.subr.mxu0 %v78
    %209 = vmatpush1.msra.mxu0 %v77
    %210 = vmatprep.subr.mxu0 %v82
    %211 = vmatpush1.msra.mxu0 %v81
    %212 = vmatprep.subr.mxu0 %v86
    %213 = vmatpush1.msra.mxu0 %v85
    %214 = vmatprep.subr.mxu0 %v90
    %215 = vmatpush1.msra.mxu0 %v89
    %216 = vmatprep.subr.mxu0 %v94
    %217 = vmatpush1.msra.mxu0 %v93
    %218 = vmatprep.subr.mxu0 %v98
    %219 = vmatpush1.msra.mxu0 %v97
    %220 = vmatprep.subr.mxu0 %v102
    %221 = vmatpush1.msra.mxu0 %v101
    %222 = vmatprep.subr.mxu0 %v106
    %223 = vmatpush1.msra.mxu0 %v105
    %224 = vmatprep.subr.mxu0 %v110
    %225 = vmatpush1.msra.mxu0 %v109
    %226 = vmatprep.subr.mxu0 %v114
    %227 = vmatpush1.msra.mxu0 %v113
    %228 = vmatprep.subr.mxu0 %v118
    %229 = vmatpush1.msra.mxu0 %v117
    %230 = vmatprep.subr.mxu0 %v122
    %231 = vmatpush1.msra.mxu0 %v121
    %232 = vmatprep.subr.mxu0 %v126
    %233 = vmatpush1.msra.mxu0 %v125
    %234 = vmatprep.subr.mxu0 %v130
    %235 = vmatpush1.msra.mxu0 %v129
    %236 = vmatprep.subr.mxu0 %v134
    %237 = vmatpush1.msra.mxu0 %v133
    %238 = vmatprep.subr.mxu0 0.0
    %239 = vmatpush1.msra.mxu0 0.0
    %240 = vmatprep.subr.mxu0 0.0
    %241 = vmatpush1.msra.mxu0 0.0
    %242 = vmatprep.subr.mxu0 0.0
    %243 = vmatpush1.msra.mxu0 0.0
    %244 = vmatprep.subr.mxu0 0.0
    %245 = vmatpush1.msra.mxu0 0.0
    %246 = vmatprep.subr.mxu0 0.0
    %247 = vmatpush1.msra.mxu0 0.0
    %248 = vmatprep.subr.mxu0 0.0
    %249 = vmatpush1.msra.mxu0 0.0
    %250 = vmatprep.subr.mxu0 0.0
    %251 = vmatpush1.msra.mxu0 0.0
    %252 = vmatprep.subr.mxu0 0.0
    %253 = vmatpush1.msra.mxu0 0.0
    %254 = vmatprep.subr.mxu0 0.0
    %255 = vmatpush1.msra.mxu0 0.0
    %256 = vmatprep.subr.mxu0 0.0
    %257 = vmatpush1.msra.mxu0 0.0
    %258 = vmatprep.subr.mxu0 0.0
    %259 = vmatpush1.msra.mxu0 0.0
    %260 = vmatprep.subr.mxu0 0.0
    %261 = vmatpush1.msra.mxu0 0.0
    %262 = vmatprep.subr.mxu0 0.0
    %263 = vmatpush1.msra.mxu0 0.0
    %264 = vmatprep.subr.mxu0 0.0
    %265 = vmatpush1.msra.mxu0 0.0
    %266 = vmatprep.subr.mxu0 0.0
    %267 = vmatpush1.msra.mxu0 0.0
    %268 = vmatprep.subr.mxu0 0.0
    %269 = vmatpush1.msra.mxu0 0.0
    %270 = vmatprep.mubr.f32.mxu0 0.0
    %271 = vmatmul.mubr.f32.gmra.mrb[0].mxu0 %v70
    %v272 = vpop.f32.mrb[0].mxu0
    %v273 = vadd.f32 0.0, %v272
    %v274 = vpop.f32.mrb[0].mxu0
    %v275 = vadd.f32 0.0, %v274
    %276 = vdwg.mxu0
    %v277 = vadd.f32 %v66, %v202
    %v278 = vadd.f32 %v67, %v204
    %v279 = vadd.f32 %v68, %v273
    %v280 = vadd.f32 %v69, %v275
    %v281 = vxor.u32 %v277, 2147483648
    %v282 = vmul.f32 %v281, 1.442695
    %v283 = vpow.pop %v282
    %v284 = vadd.f32 %v283, 1.0
    %v285 = vrcp.pop %v284
    %v286 = vmul.f32 1.0, %v285
    %v287 = vxor.u32 %v278, 2147483648
    %v288 = vmul.f32 %v287, 1.442695
    %v289 = vpow.pop %v288
    %v290 = vadd.f32 %v289, 1.0
    %v291 = vrcp.pop %v290
    %v292 = vmul.f32 1.0, %v291
    %v293 = vxor.u32 %v279, 2147483648
    %v294 = vmul.f32 %v293, 1.442695
    %v295 = vpow.pop %v294
    %v296 = vadd.f32 %v295, 1.0
    %v297 = vrcp.pop %v296
    %v298 = vmul.f32 1.0, %v297
    %v299 = vtanh.pop %v280
    %v300 = vld [vmem:[#allocation3] sm:$0xff]
    %v301 = vld [vmem:[#allocation4] sm:$0xff]
    %v302 = vmul.f32 %v292, %v300
    %v303 = vmul.f32 %v286, %v299
    %v304 = vadd.f32 %v302, %v303
    %v305 = vsub.f32 1.0, %v301
    %v306 = vmul.f32 %v304, %v305
    %v307 = vmul.f32 %v300, %v301
    %v308 = vadd.f32 %v306, %v307
    %v309 = vtanh.pop %v308
    %v310 = vmul.f32 %v298, %v309
    %311 = vst [vmem:[#allocation2] sm:$0xff] %v310
    %312 = vst [vmem:[#allocation3] sm:$0xff] %v308
    %313 = vst [vmem:[%s6] sm:$0xff] %v310
    %314 = vst [vmem:[%s7] sm:$0xff] %v308
    // Predicated region
    $region34: #{duration_lstm_cell_v1.1} parent=1 // pred_check
      _
    $region35: #{duration_lstm_cell_v1.1} parent=1 // pred_check_branch
      %316 = sbr.rel (0) target = $region37
    $region36: #{duration_lstm_cell_v1.1} parent=1 // pred_region
      _
    $region37: #{duration_lstm_cell_v1.1} parent=1 // pred_fallthru
      _
    // Predicated region
    $region38: #{duration_lstm_cell_v1.1} parent=1 // pred_check
      _
    $region39: #{duration_lstm_cell_v1.1} parent=1 // pred_check_branch
      %318 = sbr.rel (0) target = $region41
    $region40: #{duration_lstm_cell_v1.1} parent=1 // pred_region
      _
    $region41: #{duration_lstm_cell_v1.1} parent=1 // pred_fallthru
      _
    // Predicated region
    $region42: #{duration_lstm_cell_v1.1} parent=1 // pred_check
      _
    $region43: #{duration_lstm_cell_v1.1} parent=1 // pred_check_branch
      %320 = sbr.rel (0) target = $region45
    $region44: #{duration_lstm_cell_v1.1} parent=1 // pred_region
      _
    $region45: #{duration_lstm_cell_v1.1} parent=1 // pred_fallthru
      _
    // Predicated region
    $region46: #{duration_lstm_cell_v1.1} parent=1 // pred_check
      _
    $region47: #{duration_lstm_cell_v1.1} parent=1 // pred_check_branch
      %322 = sbr.rel (0) target = $region49
    $region48: #{duration_lstm_cell_v1.1} parent=1 // pred_region
      _
    $region49: #{duration_lstm_cell_v1.1} parent=1 // pred_fallthru
      _
    %323 = vsyncpa [#allocation6], 1

</llo_original>
